<compile_context>
chip_gen: v7x
topology: tpu7x:2x2x1
jax: 0.10.0
libtpu: 0.0.40
codegen_flags: <defaults>
</compile_context>

<pallas_src>
import jax
import jax.numpy as jnp
from jax import lax
from jax.experimental import pallas as pl
from jax.experimental.pallas import tpu as pltpu


def _round_up(x, m):
    return (x + m - 1) // m * m


def _divisors(n):
    out = set()
    i = 1
    while i * i <= n:
        if n % i == 0:
            out.add(i)
            out.add(n // i)
        i += 1
    return sorted(out, reverse=True)


def _physical_vmem_bytes():
    """Physical per-core VMEM (fallback: smallest known generation, 64 MiB)."""
    try:
        cap = getattr(pltpu.get_tpu_info(), "vmem_capacity_bytes", None)
        if cap:
            return int(cap)
    except Exception:
        pass
    return 64 * 1024 * 1024


# Fully unroll the per-(row, candidate) DMA issue loops only while the issue count is
# small; otherwise loop over rows with lax.fori_loop to bound code size / compile time.
_UNROLLED_GATHER_LIMIT = 256


# ----------------------------------------------------------------------------
# Full-vocabulary kernel:  logits = ReLU(x @ W^T + b1) @ emb^T + bias
# ----------------------------------------------------------------------------
def _full_vocab_kernel(x_ref, w_ref, b1_ref, emb_ref, bias_ref, o_ref, h_ref):
    # h = ReLU(x @ W^T + b1): computed once per row block, carried across the inner
    # ("arbitrary") vocab axis in a VMEM scratch.  x is cast to the matmul dtype so the
    # projection runs bf16 x bf16 on the MXU when enabled (f32 accumulation).
    @pl.when(pl.program_id(1) == 0)
    def _():
        h = jnp.dot(x_ref[...].astype(w_ref.dtype), w_ref[...],
                    preferred_element_type=jnp.float32)
        h_ref[...] = jnp.maximum(h + b1_ref[...], 0.0).astype(h_ref.dtype)

    # logits tile = h @ emb_tile^T without materializing a transpose: contract the
    # hidden (last) dim of both operands on the MXU with f32 accumulation.
    logits = lax.dot_general(
        h_ref[...], emb_ref[...],
        dimension_numbers=(((1,), (1,)), ((), ())),
        preferred_element_type=jnp.float32)
    o_ref[...] = (logits + bias_ref[...]).astype(o_ref.dtype)


# ----------------------------------------------------------------------------
# Candidate-scoring kernel: double-buffered in-kernel embedding gather + MXU dot.
# ----------------------------------------------------------------------------
def _make_candidates_kernel(tn, num_candidates):
    C = num_candidates

    def kernel(cand_ref,                          # SMEM scalar prefetch: (Np*C,) int32
               x_ref, w_ref, b1_ref, cbias_ref,   # VMEM blocks
               emb_hbm,                           # full emb table (memory_space=pl.ANY)
               o_ref,                             # (tn, C) f32 output tile
               cemb_buf, sem):                    # (2, tn, C, D) gather buffer + 2 DMA sems
        i = pl.program_id(0)
        nb = pl.num_programs(0)
        slot = i % 2

        def issue(block_idx, dst_slot):
            base = block_idx * (tn * C)

            def issue_row(r):
                off = base + r * C
                for c in range(C):
                    idx = cand_ref[off + c]
                    pltpu.make_async_copy(
                        emb_hbm.at[idx], cemb_buf.at[dst_slot, r, c],
                        sem.at[dst_slot]).start()

            if tn * C <= _UNROLLED_GATHER_LIMIT:
                for r in range(tn):
                    issue_row(r)
            else:
                def body(r, carry):
                    issue_row(r)
                    return carry
                lax.fori_loop(0, tn, body, 0)

        # Prime the pipeline on the first row block.
        @pl.when(i == 0)
        def _():
            issue(i, slot)

        # Prefetch the next row block's candidate embeddings while this block runs its
        # projection + scoring (cross-step double buffering; grid axis is "arbitrary").
        @pl.when(i + 1 < nb)
        def _():
            issue(i + 1, 1 - slot)

        # h = ReLU(x @ W^T + b1) on the MXU (bf16 operands when enabled, f32 acc);
        # this overlaps with the in-flight gather DMAs.
        h = jnp.dot(x_ref[...].astype(w_ref.dtype), w_ref[...],
                    preferred_element_type=jnp.float32)
        h = jnp.maximum(h + b1_ref[...], 0.0)
        hq = h.astype(cemb_buf.dtype)[:, None, :]            # (tn, 1, D)

        # One wait for the whole gathered slab: every row copy of this block signaled
        # sem[slot], so a single descriptor of tn*C*D bytes matches their sum.
        pltpu.make_async_copy(cemb_buf.at[1 - slot], cemb_buf.at[slot],
                              sem.at[slot]).wait()

        # logits[n, c] = sum_d h[n, d] * emb[cand[n, c], d]  (batched over rows, MXU).
        # TODO(synk): if candidate sets repeat across rows, dedupe ids per block and run
        #             a single (tn, D) x (D, U) MXU matmul instead of N*C row DMAs.
        scores = lax.dot_general(
            hq, cemb_buf[slot],
            dimension_numbers=(((2,), (2,)), ((0,), (0,))),
            preferred_element_type=jnp.float32)[:, 0, :]      # (tn, C)
        o_ref[...] = (scores + cbias_ref[...]).astype(o_ref.dtype)

    return kernel


# ----------------------------------------------------------------------------
# Module wrapper
# ----------------------------------------------------------------------------
class DotProductPredictionHead:
    """Shared-embedding prediction head (https://arxiv.org/abs/1904.06690):
         h      = ReLU(Linear(x))
         logits = h @ emb[:vocab]^T + bias                        (candidates is None)
         logits = sum_d h * emb[candidates] + bias[candidates]    (candidate scoring)
    """

    def __init__(self, d_model, num_items, token_embedding_weight, key,
                 use_bf16_matmul=True, logits_dtype=jnp.float32,
                 max_tile_rows=512, max_tile_vocab=8192, cand_rows_per_step=32):
        self.d_model = d_model
        self.vocab_size = num_items + 1
        self.logits_dtype = logits_dtype
        self.max_tile_rows = max(8, int(max_tile_rows))
        self.max_tile_vocab = max(128, int(max_tile_vocab))
        self.cand_rows_per_step = max(8, _round_up(int(cand_rows_per_step), 8))

        k_w, k_b = jax.random.split(key)
        bound = 1.0 / (d_model ** 0.5)
        lin_w = jax.random.uniform(k_w, (d_model, d_model), jnp.float32, -bound, bound)
        mm_dtype = jnp.bfloat16 if use_bf16_matmul else jnp.float32
        self.lin_w = lin_w                                       # (out, in) PyTorch layout, f32
        self.lin_w_t = jnp.asarray(lin_w.T).astype(mm_dtype)     # pre-transposed, matmul dtype
        self.lin_b = jax.random.uniform(k_b, (1, d_model), jnp.float32, -bound, bound)
        self.bias = jnp.zeros((1, self.vocab_size), jnp.float32)

        # Shared embedding table: slice to vocab, cast to the matmul dtype, and pad the
        # vocab dim to a multiple of 128 ONCE here (no full-table HBM pad per call).
        self.token_embedding_weight = token_embedding_weight
        emb = token_embedding_weight[: self.vocab_size].astype(mm_dtype)
        vp = _round_up(self.vocab_size, 128)
        if vp != self.vocab_size:
            emb = jnp.pad(emb, ((0, vp - self.vocab_size), (0, 0)))
        self.emb_mm = emb

    # -- public forward -------------------------------------------------------
    def __call__(self, x, b_seq=None, candidates=None):
        # b_seq is accepted for parity with the PyTorch module; its forward ignores it.
        if candidates is None:
            lead = x.shape[:-1]
            out = self._full_vocab_logits(x.reshape(-1, x.shape[-1]))
            return out.reshape(*lead, out.shape[-1])
        return self._candidate_logits(x, candidates)

    # -- tile selection for the full-vocab path --------------------------------
    def _full_vocab_tiles(self, N, D):
        emb = self.emb_mm
        Vp = emb.shape[0]
        esz = emb.dtype.itemsize
        wsz = self.lin_w_t.dtype.itemsize
        osz = jnp.dtype(self.logits_dtype).itemsize

        phys = _physical_vmem_bytes()
        budget = int(phys * 0.55)

        n_rows = _round_up(max(N, 1), 8)
        row_cap = min(_round_up(self.max_tile_rows, 8), n_rows)
        if n_rows >= 16:
            # keep >= 2 row blocks so multi-TensorCore parts can shard the parallel axis
            row_cap = min(row_cap, max(8, _round_up((n_rows + 1) // 2, 8)))

        tn_opts = [t for t in (1024, 512, 384, 256, 128, 64, 32, 16, 8) if t <= row_cap]
        if not tn_opts:
            tn_opts = [row_cap]

        tv_cap = min(_round_up(self.max_tile_vocab, 128), Vp)
        tv_opts = sorted({128 * d for d in _divisors(Vp // 128) if 128 * d <= tv_cap},
                         reverse=True)
        if not tv_opts:
            tv_opts = [Vp]

        def need(tn, tv):
            return (2 * (tn * D * 4            # x block (f32, double-buffered)
                         + tv * D * esz        # emb tile
                         + tv * 4              # output-bias tile
                         + tn * tv * osz)      # logits tile
                    + 2 * (D * D * wsz + D * 4)  # W^T, b1 (constant blocks)
                    + tn * D * esz)            # h scratch

        tv_floor = min(512, tv_opts[0])
        best = None
        fallback = None
        for tn in tn_opts:                       # descending: tn is the primary lever
            fit_tv = next((tv for tv in tv_opts if need(tn, tv) <= budget), None)
            if fit_tv is None:
                continue
            if fallback is None:
                fallback = (tn, fit_tv)
            if fit_tv >= tv_floor:
                best = (tn, fit_tv)
                break
        tn, tv = best or fallback or (tn_opts[-1], tv_opts[-1])

        limit = max(need(tn, tv) + (4 << 20), 32 << 20)
        limit = min(limit, int(phys * 0.75))
        limit = max(limit, need(tn, tv) + (2 << 20))   # never below what the kernel needs
        return tn, tv, int(limit)

    # -- full-vocabulary logits ------------------------------------------------
    def _full_vocab_logits(self, x):
        N, D = x.shape
        V = self.vocab_size
        emb = self.emb_mm
        Vp = emb.shape[0]
        esz = emb.dtype.itemsize
        wsz = self.lin_w_t.dtype.itemsize
        osz = jnp.dtype(self.logits_dtype).itemsize

        tn, tv, vmem_limit = self._full_vocab_tiles(N, D)

        Np = _round_up(N, tn)
        xp = x if Np == N else jnp.pad(x, ((0, Np - N), (0, 0)))
        biasp = self.bias if Vp == V else jnp.pad(self.bias, ((0, 0), (0, Vp - V)))

        grid = (Np // tn, Vp // tv)
        fn = pl.pallas_call(
            _full_vocab_kernel,
            out_shape=jax.ShapeDtypeStruct((Np, Vp), self.logits_dtype),
            grid_spec=pltpu.PrefetchScalarGridSpec(
                num_scalar_prefetch=0,
                grid=grid,
                in_specs=[
                    pl.BlockSpec((tn, D), lambda i, j: (i, 0)),   # x rows (reused over j)
                    pl.BlockSpec((D, D), lambda i, j: (0, 0)),    # W^T (constant block)
                    pl.BlockSpec((1, D), lambda i, j: (0, 0)),    # linear bias
                    pl.BlockSpec((tv, D), lambda i, j: (j, 0)),   # emb tile (streamed)
                    pl.BlockSpec((1, tv), lambda i, j: (0, j)),   # output-bias tile
                ],
                out_specs=pl.BlockSpec((tn, tv), lambda i, j: (i, j)),
                scratch_shapes=[pltpu.VMEM((tn, D), emb.dtype)],  # h, once per row block
            ),
            compiler_params=pltpu.CompilerParams(
                dimension_semantics=("parallel", "arbitrary"),
                vmem_limit_bytes=vmem_limit),
            cost_estimate=pl.CostEstimate(
                flops=2 * Np * D * D + 2 * Np * D * Vp,
                transcendentals=0,
                bytes_accessed=(Np * D * 4 + D * D * wsz + D * 4
                                + (Np // tn) * Vp * D * esz + Vp * 4
                                + Np * Vp * osz)),
        )
        out = fn(xp, self.lin_w_t, self.lin_b, emb, biasp)
        if Np != N or Vp != V:
            out = out[:N, :V]
        return out

    # -- candidate logits ------------------------------------------------------
    def _candidate_logits(self, x, candidates):
        N, D = x.shape
        C = int(candidates.shape[1])
        emb = self.emb_mm
        esz = emb.dtype.itemsize
        wsz = self.lin_w_t.dtype.itemsize

        tn = self.cand_rows_per_step
        Np = _round_up(N, tn)

        xp = x if Np == N else jnp.pad(x, ((0, Np - N), (0, 0)))
        cand = candidates.astype(jnp.int32)
        candp = cand if Np == N else jnp.pad(cand, ((0, Np - N), (0, 0)))
        cand_flat = candp.reshape(-1)             # 1-D ids: cheap SMEM padding (pow2 bytes)

        # Per-(row, candidate) output-bias gather stays in plain-JAX glue (N*C scalars);
        # the heavy (N, C, D) embedding gather happens in-kernel via DMA.
        cbias = jnp.take(self.bias[0], cand, axis=0)          # (N, C)
        cbiasp = cbias if Np == N else jnp.pad(cbias, ((0, Np - N), (0, 0)))

        phys = _physical_vmem_bytes()
        need = (2 * (tn * D * 4 + D * D * wsz + D * 4 + 2 * tn * C * 4)
                + 2 * tn * C * D * esz)                       # double-buffered gather slab
        vmem_limit = max(need + (4 << 20), 32 << 20)
        vmem_limit = min(vmem_limit, int(phys * 0.75))
        vmem_limit = int(max(vmem_limit, need + (2 << 20)))

        grid = (Np // tn,)
        fn = pl.pallas_call(
            _make_candidates_kernel(tn, C),
            out_shape=jax.ShapeDtypeStruct((Np, C), jnp.float32),
            grid_spec=pltpu.PrefetchScalarGridSpec(
                num_scalar_prefetch=1,            # flattened candidate ids -> SMEM
                grid=grid,
                in_specs=[
                    pl.BlockSpec((tn, D), lambda i, cand_ref: (i, 0)),   # x row block
                    pl.BlockSpec((D, D), lambda i, cand_ref: (0, 0)),    # W^T
                    pl.BlockSpec((1, D), lambda i, cand_ref: (0, 0)),    # linear bias
                    pl.BlockSpec((tn, C), lambda i, cand_ref: (i, 0)),   # gathered out-bias
                    pl.BlockSpec(memory_space=pl.ANY),                   # emb stays in HBM
                ],
                out_specs=pl.BlockSpec((tn, C), lambda i, cand_ref: (i, 0)),
                scratch_shapes=[
                    pltpu.VMEM((2, tn, C, D), emb.dtype),   # double-buffered gather slab
                    pltpu.SemaphoreType.DMA((2,)),
                ],
            ),
            compiler_params=pltpu.CompilerParams(
                # "arbitrary": the cross-step gather prefetch chains consecutive steps.
                dimension_semantics=("arbitrary",),
                vmem_limit_bytes=vmem_limit),
            cost_estimate=pl.CostEstimate(
                flops=2 * Np * D * D + 2 * Np * C * D,
                transcendentals=0,
                bytes_accessed=(Np * D * 4 + D * D * wsz + D * 4
                                + Np * C * D * esz + 2 * Np * C * 4)),
        )
        out = fn(cand_flat, xp, self.lin_w_t, self.lin_b, cbiasp, emb)
        return out if Np == N else out[:N]


# ----------------------------------------------------------------------------
# Pure-JAX reference (mirrors the PyTorch forward, f32 everywhere)
# ----------------------------------------------------------------------------
def _reference(head, x, candidates=None):
    h = jnp.maximum(x @ head.lin_w.T + head.lin_b, 0.0)
    emb = head.token_embedding_weight[: head.vocab_size]
    if candidates is None:
        return h @ emb.T + head.bias
    cand_emb = jnp.take(emb, candidates, axis=0)
    logits = jnp.sum(h[:, None, :] * cand_emb, axis=-1)
    return logits + jnp.take(head.bias[0], candidates, axis=0)


if __name__ == "__main__":
    key = jax.random.PRNGKey(0)
    k_x, k_emb, k_head, k_cand, k_bias = jax.random.split(key, 5)

    d_model = 32
    num_items = 250            # vocab_size = 251 -> vocab padded to 384
    N = 10                     # tokens (batch*positions flattened) -> row padding
    C = 13                     # candidates per row

    x = jax.random.normal(k_x, (N, d_model), jnp.float32)
    token_emb = jax.random.normal(k_emb, (num_items + 2, d_model), jnp.float32)
    candidates = jax.random.randint(k_cand, (N, C), 0, num_items + 1, jnp.int32)
    bias_val = 0.1 * jax.random.normal(k_bias, (1, num_items + 1), jnp.float32)
    b_seq = None               # unused by the forward

    # f32 head with tiny tile caps: exercises a real (2 x 3) full-vocab grid, the
    # h-scratch carry across vocab tiles, and a 2-step double-buffered candidate gather
    # (fully-unrolled DMA-issue path).
    head_f32 = DotProductPredictionHead(
        d_model, num_items, token_emb, k_head, use_bf16_matmul=False,
        max_tile_rows=8, max_tile_vocab=128, cand_rows_per_step=8)
    # bf16 head with default (large) caps: exercises the single-vocab-tile path and the
    # fori_loop gather-issue path (tn * C > unroll limit).
    head_bf16 = DotProductPredictionHead(
        d_model, num_items, token_emb, k_head, use_bf16_matmul=True)
    head_f32.bias = bias_val
    head_bf16.bias = bias_val

    ref_full = _reference(head_f32, x, None)
    ref_cand = _reference(head_f32, x, candidates)

    out_full_f32 = jax.block_until_ready(head_f32(x, b_seq))
    out_cand_f32 = jax.block_until_ready(head_f32(x, b_seq, candidates=candidates))
    out_full_bf16 = jax.block_until_ready(head_bf16(x, b_seq))
    out_cand_bf16 = jax.block_until_ready(head_bf16(x, b_seq, candidates=candidates))

    assert out_full_f32.shape == (N, num_items + 1)
    assert out_cand_f32.shape == (N, C)
    assert out_full_bf16.shape == (N, num_items + 1)
    assert out_cand_bf16.shape == (N, C)

    # f32 MXU operands: tight match with the PyTorch-style reference.
    assert jnp.allclose(out_full_f32, ref_full, atol=1e-2, rtol=1e-2), \
        float(jnp.max(jnp.abs(out_full_f32 - ref_full)))
    assert jnp.allclose(out_cand_f32, ref_cand, atol=1e-2, rtol=1e-2), \
        float(jnp.max(jnp.abs(out_cand_f32 - ref_cand)))
    # bf16 MXU operands with f32 accumulation: looser tolerance by construction.
    assert jnp.allclose(out_full_bf16, ref_full, atol=2e-1, rtol=5e-2), \
        float(jnp.max(jnp.abs(out_full_bf16 - ref_full)))
    assert jnp.allclose(out_cand_bf16, ref_cand, atol=2e-1, rtol=5e-2), \
        float(jnp.max(jnp.abs(out_cand_bf16 - ref_cand)))

    print("KERNEL_OK")
</pallas_src>

<mosaic_0001>
module attributes {stable_mosaic.version = 11 : i64} {
  func.func @_full_vocab_kernel(%arg0: i32, %arg1: i32, %arg2: memref<8x32xf32, #tpu.memory_space<vmem>>, %arg3: memref<32x32xf32, #tpu.memory_space<vmem>>, %arg4: memref<1x32xf32, #tpu.memory_space<vmem>>, %arg5: memref<128x32xf32, #tpu.memory_space<vmem>>, %arg6: memref<1x128xf32, #tpu.memory_space<vmem>>, %arg7: memref<8x128xf32, #tpu.memory_space<vmem>>, %arg8: memref<8x32xf32, #tpu.memory_space<vmem>>) attributes {dimension_semantics = [#tpu.dimension_semantics<parallel>, #tpu.dimension_semantics<arbitrary>], iteration_bounds = array<i64: 2, 2>, scalar_prefetch = 0 : i64, scratch_operands = 1 : i64, tpu.core_type = #tpu.core_type<tc>, window_params = [{transform_indices = @transform_0, window_bounds = array<i64: 8, 32>}, {pipeline_mode = #tpu.pipeline_mode<synchronous>, transform_indices = @transform_1, window_bounds = array<i64: 32, 32>}, {pipeline_mode = #tpu.pipeline_mode<synchronous>, transform_indices = @transform_2, window_bounds = array<i64: 1, 32>}, {transform_indices = @transform_3, window_bounds = array<i64: 128, 32>}, {transform_indices = @transform_4, window_bounds = array<i64: 1, 128>}, {transform_indices = @transform_5, window_bounds = array<i64: 8, 128>}]} {
    %c0_i32 = arith.constant 0 : i32
    %0 = arith.cmpi eq, %arg1, %c0_i32 : i32
    %1 = arith.extui %0 : i1 to i32
    %c0_i32_0 = arith.constant 0 : i32
    %2 = arith.cmpi ne, %1, %c0_i32_0 : i32
    scf.if %2 {
      %c0_8 = arith.constant 0 : index
      %c0_9 = arith.constant 0 : index
      %10 = vector.load %arg2[%c0_8, %c0_9] : memref<8x32xf32, #tpu.memory_space<vmem>>, vector<8x32xf32>
      %c0_10 = arith.constant 0 : index
      %c0_11 = arith.constant 0 : index
      %11 = vector.load %arg3[%c0_10, %c0_11] : memref<32x32xf32, #tpu.memory_space<vmem>>, vector<32x32xf32>
      %cst_12 = arith.constant dense<0.000000e+00> : vector<8x32xf32>
      %12 = tpu.matmul %10, %11, %cst_12 {dimension_numbers = #tpu.dot_dimension_numbers<[1], [0], [0], [1], [0, 0, 1, 1], [], []>} : vector<8x32xf32>, vector<32x32xf32>, vector<8x32xf32> -> vector<8x32xf32>
      %c0_13 = arith.constant 0 : index
      %c0_14 = arith.constant 0 : index
      %13 = vector.load %arg4[%c0_13, %c0_14] : memref<1x32xf32, #tpu.memory_space<vmem>>, vector<1x32xf32>
      %14 = vector.broadcast %13 : vector<1x32xf32> to vector<8x32xf32>
      %15 = arith.addf %12, %14 : vector<8x32xf32>
      %cst_15 = arith.constant 0.000000e+00 : f32
      %16 = vector.broadcast %cst_15 : f32 to vector<8x32xf32>
      %17 = arith.maximumf %15, %16 : vector<8x32xf32>
      %c0_16 = arith.constant 0 : index
      %c0_17 = arith.constant 0 : index
      %18 = vector.load %arg8[%c0_16, %c0_17] : memref<8x32xf32, #tpu.memory_space<vmem>>, vector<8x32xf32>
      tpu.vector_store %arg8[%c0_16, %c0_17], %17 {strides = array<i32>} : memref<8x32xf32, #tpu.memory_space<vmem>>, vector<8x32xf32>,
    } else {
    }
    %c0 = arith.constant 0 : index
    %c0_1 = arith.constant 0 : index
    %3 = vector.load %arg8[%c0, %c0_1] : memref<8x32xf32, #tpu.memory_space<vmem>>, vector<8x32xf32>
    %c0_2 = arith.constant 0 : index
    %c0_3 = arith.constant 0 : index
    %4 = vector.load %arg5[%c0_2, %c0_3] : memref<128x32xf32, #tpu.memory_space<vmem>>, vector<128x32xf32>
    %cst = arith.constant dense<0.000000e+00> : vector<8x128xf32>
    %5 = tpu.matmul %3, %4, %cst {dimension_numbers = #tpu.dot_dimension_numbers<[1], [1], [0], [0], [0, 0, 1, 0], [], []>} : vector<8x32xf32>, vector<128x32xf32>, vector<8x128xf32> -> vector<8x128xf32>
    %c0_4 = arith.constant 0 : index
    %c0_5 = arith.constant 0 : index
    %6 = vector.load %arg6[%c0_4, %c0_5] : memref<1x128xf32, #tpu.memory_space<vmem>>, vector<1x128xf32>
    %7 = vector.broadcast %6 : vector<1x128xf32> to vector<8x128xf32>
    %8 = arith.addf %5, %7 : vector<8x128xf32>
    %c0_6 = arith.constant 0 : index
    %c0_7 = arith.constant 0 : index
    %9 = vector.load %arg7[%c0_6, %c0_7] : memref<8x128xf32, #tpu.memory_space<vmem>>, vector<8x128xf32>
    tpu.vector_store %arg7[%c0_6, %c0_7], %8 {strides = array<i32>} : memref<8x128xf32, #tpu.memory_space<vmem>>, vector<8x128xf32>,
    return
  }
  func.func @transform_0(%arg0: i32, %arg1: i32) -> (i32, i32) {
    %c0_i32 = arith.constant 0 : i32
    %c0_i32_0 = arith.constant 0 : i32
    return %arg0, %c0_i32 : i32, i32
  }
  func.func @transform_1(%arg0: i32, %arg1: i32) -> (i32, i32) {
    %c0_i32 = arith.constant 0 : i32
    %c0_i32_0 = arith.constant 0 : i32
    %c0_i32_1 = arith.constant 0 : i32
    return %c0_i32, %c0_i32_0 : i32, i32
  }
  func.func @transform_2(%arg0: i32, %arg1: i32) -> (i32, i32) {
    %c0_i32 = arith.constant 0 : i32
    %c0_i32_0 = arith.constant 0 : i32
    %c0_i32_1 = arith.constant 0 : i32
    return %c0_i32, %c0_i32_0 : i32, i32
  }
  func.func @transform_3(%arg0: i32, %arg1: i32) -> (i32, i32) {
    %c0_i32 = arith.constant 0 : i32
    %c0_i32_0 = arith.constant 0 : i32
    return %arg1, %c0_i32 : i32, i32
  }
  func.func @transform_4(%arg0: i32, %arg1: i32) -> (i32, i32) {
    %c0_i32 = arith.constant 0 : i32
    %c0_i32_0 = arith.constant 0 : i32
    return %c0_i32, %arg1 : i32, i32
  }
  func.func @transform_5(%arg0: i32, %arg1: i32) -> (i32, i32) {
    %c0_i32 = arith.constant 0 : i32
    return %arg0, %arg1 : i32, i32
  }
}

</mosaic_0001>

<llo_original>
// kernel: tpu_custom_call.1
$region0: #{tpu_custom_call.1}
  #allocation0 [shape = 'u32[]', space=smem, size = 0x4, offset = 0x4, fixed_abs, tag = 'smem constant byte address 0x4 - core index']
  #allocation1 [shape = 'u32[144,128]{1,0:T(1,128)}', space=vmem, size = 0x12000, scoped, tag = 'internal scratch']
  #allocation2 [shape = 'f32[8,32]{1,0:T(8,128)}', space=vmem, size = 0x1000, scoped, tag = 'scratch operand']
  %s0 = inlined_call_operand.vmem [shape: f32[16,32], index: 0, kind: input, shape index: {}]
  %s1 = inlined_call_operand.vmem [shape: f32[32,32], index: 1, kind: input, shape index: {}]
  %s2 = inlined_call_operand.vmem [shape: f32[1,32], index: 2, kind: input, shape index: {}]
  %s3 = inlined_call_operand.vmem [shape: f32[256,32], index: 3, kind: input, shape index: {}]
  %s4 = inlined_call_operand.vmem [shape: f32[1,256], index: 4, kind: input, shape index: {}]
  %s5 = inlined_call_operand.hbm [shape: f32[16,256], index: 5, kind: output, shape index: {}]
  %s6 = sld [smem:[#allocation0]]
  $region57: #{tpu_custom_call.1} parent=0
    _
  %s8 = ssub.s32 1, %s6
  %s9 = scalar_select 0, %s8, %s6
  $region1: #{tpu_custom_call.1} parent=0
    #allocation3 [shape = 'u8[8192]{0}', space=vmem, size = 0x2000, scoped, tag = 'output window, operand 0']
    #allocation4 [shape = 's32[2]{0}', space=sflag, size = 0x8, scoped, tag = 'scoped memory for tpu_custom_call.1']
    %10 = vsyncpa [#allocation4], 0
    %s11 = scalar_lea.sflag [#allocation4], 1
    %12 = vsyncpa %s11, 0
    loop: start=0, step=1, limit=6
    $region2: #{tpu_custom_call.1} parent=1 // loop_pre_header
      _
    $region3: #{tpu_custom_call.1} parent=1 // loop_header
      %s14 = sphi 0, %s18
      %p15 = scmp.ge.s32.totalorder %s14, 6
      %s21 = sphi 0, %s33
      %s22 = sphi 0, %s29
      %s23 = sphi 0, %s21
      %s24 = sphi 0, %s22
      %s25 = sphi 0, %s23
      %s26 = sphi 0, %s24
      %s36 = sphi 0, %s38
      %s39 = sphi 0, %s36
      %s40 = sphi 0, %s39
      %s56 = sphi 0, %s40
      %s60 = sphi 0, %s60
      %s62 = sphi 0, %s60
      %s63 = sphi 0, %s62
      %s77 = sphi 0, %s63
      %s81 = sphi 0, %s81
      %s83 = sphi 0, %s81
      %s84 = sphi 0, %s83
      %s98 = sphi 0, %s84
      %s104 = sphi 0, %s106
      %s107 = sphi 0, %s104
      %s108 = sphi 0, %s107
      %s124 = sphi 0, %s108
      %s130 = sphi 0, %s132
      %s133 = sphi 0, %s130
      %s134 = sphi 0, %s133
      %s150 = sphi 0, %s134
      %s158 = sphi 0, %s160
      %s161 = sphi 0, %s158
      %s162 = sphi 0, %s161
      %s178 = sphi 0, %s162
    $region4: #{tpu_custom_call.1} parent=1 // loop_header_branch
      %17 = sbr.rel (%p15) target = $region8
    $region5: #{tpu_custom_call.1} parent=1 // loop_body
      %s19 = ssub.s32 %s14, 1
      %s20 = ssub.s32 %s14, 2
      %s27 = sadd.s32 1, %s22
      %p28 = scmp.ge.s32.totalorder %s27, 2
      %s29 = scalar_select %p28, 0, %s27
      %s30 = sadd.s32 1, %s21
      %s31 = scalar_select %p28, %s30, %s21
      %p32 = scmp.ge.s32.totalorder %s31, 2
      %s33 = scalar_select %p32, 0, %s31
      %s34 = ssub.s32 %s21, %s33
      %p35 = scmp.eq.s32.totalorder %s34, 0
      %s37 = sadd.s32 %s36, 1
      %s38 = scalar_select %p35, %s36, %s37
      %p41 = pneg %p35
      %p42 = scmp.eq.s32.totalorder %s14, 3
      %p43 = por %p41, %p42
      %p44 = scmp.ne.s32.totalorder %s36, %s39
      %p45 = scmp.eq.s32.totalorder %s14, 0
      %p46 = por %p44, %p45
      %p47 = scmp.ne.s32.totalorder %s36, %s39
      %p48 = scmp.eq.s32.totalorder %s19, 3
      %p49 = por %p47, %p48
      %p50 = scmp.ne.s32.totalorder %s39, %s40
      %p51 = scmp.eq.s32.totalorder %s19, 0
      %p52 = por %p50, %p51
      %p53 = scmp.ne.s32.totalorder %s39, %s40
      %p54 = scmp.eq.s32.totalorder %s20, 3
      %p55 = por %p53, %p54
      %p57 = scmp.ne.s32.totalorder %s40, %s56
      %p58 = scmp.eq.s32.totalorder %s20, 0
      %p59 = por %p57, %p58
      %s61 = sadd.s32 %s60, 1
      %p64 = scmp.eq.s32.totalorder %s14, 3
      %p65 = scmp.ne.s32.totalorder %s60, %s62
      %p66 = scmp.eq.s32.totalorder %s14, 0
      %p67 = por %p65, %p66
      %p68 = scmp.ne.s32.totalorder %s60, %s62
      %p69 = scmp.eq.s32.totalorder %s19, 3
      %p70 = por %p68, %p69
      %p71 = scmp.ne.s32.totalorder %s62, %s63
      %p72 = scmp.eq.s32.totalorder %s19, 0
      %p73 = por %p71, %p72
      %p74 = scmp.ne.s32.totalorder %s62, %s63
      %p75 = scmp.eq.s32.totalorder %s20, 3
      %p76 = por %p74, %p75
      %p78 = scmp.ne.s32.totalorder %s63, %s77
      %p79 = scmp.eq.s32.totalorder %s20, 0
      %p80 = por %p78, %p79
      %s82 = sadd.s32 %s81, 1
      %p85 = scmp.eq.s32.totalorder %s14, 3
      %p86 = scmp.ne.s32.totalorder %s81, %s83
      %p87 = scmp.eq.s32.totalorder %s14, 0
      %p88 = por %p86, %p87
      %p89 = scmp.ne.s32.totalorder %s81, %s83
      %p90 = scmp.eq.s32.totalorder %s19, 3
      %p91 = por %p89, %p90
      %p92 = scmp.ne.s32.totalorder %s83, %s84
      %p93 = scmp.eq.s32.totalorder %s19, 0
      %p94 = por %p92, %p93
      %p95 = scmp.ne.s32.totalorder %s83, %s84
      %p96 = scmp.eq.s32.totalorder %s20, 3
      %p97 = por %p95, %p96
      %p99 = scmp.ne.s32.totalorder %s84, %s98
      %p100 = scmp.eq.s32.totalorder %s20, 0
      %p101 = por %p99, %p100
      %s102 = ssub.s32 %s22, %s29
      %p103 = scmp.eq.s32.totalorder %s102, 0
      %s105 = sadd.s32 %s104, 1
      %s106 = scalar_select %p103, %s104, %s105
      %p109 = pneg %p103
      %p110 = scmp.eq.s32.totalorder %s14, 3
      %p111 = por %p109, %p110
      %p112 = scmp.ne.s32.totalorder %s104, %s107
      %p113 = scmp.eq.s32.totalorder %s14, 0
      %p114 = por %p112, %p113
      %p115 = scmp.ne.s32.totalorder %s104, %s107
      %p116 = scmp.eq.s32.totalorder %s19, 3
      %p117 = por %p115, %p116
      %p118 = scmp.ne.s32.totalorder %s107, %s108
      %p119 = scmp.eq.s32.totalorder %s19, 0
      %p120 = por %p118, %p119
      %p121 = scmp.ne.s32.totalorder %s107, %s108
      %p122 = scmp.eq.s32.totalorder %s20, 3
      %p123 = por %p121, %p122
      %p125 = scmp.ne.s32.totalorder %s108, %s124
      %p126 = scmp.eq.s32.totalorder %s20, 0
      %p127 = por %p125, %p126
      %s128 = ssub.s32 %s22, %s29
      %p129 = scmp.eq.s32.totalorder %s128, 0
      %s131 = sadd.s32 %s130, 1
      %s132 = scalar_select %p129, %s130, %s131
      %p135 = pneg %p129
      %p136 = scmp.eq.s32.totalorder %s14, 3
      %p137 = por %p135, %p136
      %p138 = scmp.ne.s32.totalorder %s130, %s133
      %p139 = scmp.eq.s32.totalorder %s14, 0
      %p140 = por %p138, %p139
      %p141 = scmp.ne.s32.totalorder %s130, %s133
      %p142 = scmp.eq.s32.totalorder %s19, 3
      %p143 = por %p141, %p142
      %p144 = scmp.ne.s32.totalorder %s133, %s134
      %p145 = scmp.eq.s32.totalorder %s19, 0
      %p146 = por %p144, %p145
      %p147 = scmp.ne.s32.totalorder %s133, %s134
      %p148 = scmp.eq.s32.totalorder %s20, 3
      %p149 = por %p147, %p148
      %p151 = scmp.ne.s32.totalorder %s134, %s150
      %p152 = scmp.eq.s32.totalorder %s20, 0
      %p153 = por %p151, %p152
      %s154 = ssub.s32 %s21, %s33
      %s155 = ssub.s32 %s22, %s29
      %s156 = sor.u32 %s154, %s155
      %p157 = scmp.eq.s32.totalorder %s156, 0
      %s159 = sadd.s32 %s158, 1
      %s160 = scalar_select %p157, %s158, %s159
      %p163 = pneg %p157
      %p164 = scmp.eq.s32.totalorder %s14, 3
      %p165 = por %p163, %p164
      %p166 = scmp.ne.s32.totalorder %s158, %s161
      %p167 = scmp.eq.s32.totalorder %s14, 0
      %p168 = por %p166, %p167
      %p169 = scmp.ne.s32.totalorder %s158, %s161
      %p170 = scmp.eq.s32.totalorder %s19, 3
      %p171 = por %p169, %p170
      %p172 = scmp.ne.s32.totalorder %s161, %s162
      %p173 = scmp.eq.s32.totalorder %s19, 0
      %p174 = por %p172, %p173
      %p175 = scmp.ne.s32.totalorder %s161, %s162
      %p176 = scmp.eq.s32.totalorder %s20, 3
      %p177 = por %p175, %p176
      %p179 = scmp.ne.s32.totalorder %s162, %s178
      %p180 = scmp.eq.s32.totalorder %s20, 0
      %p181 = por %p179, %p180
      %p182 = scmp.le.s32.totalorder 1, %s14
      %p183 = scmp.lt.s32.totalorder %s14, 5
      %p184 = pnand %p182, %p183
      %p185 = pneg %p184
      // Predicated region
      $region9: #{tpu_custom_call.1} parent=5 // pred_check
        _
      $region10: #{tpu_custom_call.1} parent=5 // pred_check_branch
        %187 = sbr.rel (%p184) target = $region12
      $region11: #{tpu_custom_call.1} parent=5 // pred_region
        %s188 = ssub.s32 %s14, 1
        // Predicated region
        $region13: #{tpu_custom_call.1} parent=11 // pred_check
          %p189 = pneg %p73
        $region14: #{tpu_custom_call.1} parent=11 // pred_check_branch
          %191 = sbr.rel (%p189) target = $region16
        $region15: #{tpu_custom_call.1} parent=11 // pred_region
          _
        $region16: #{tpu_custom_call.1} parent=11 // pred_fallthru
          _
        // Predicated region
        $region17: #{tpu_custom_call.1} parent=11 // pred_check
          %p192 = pneg %p94
        $region18: #{tpu_custom_call.1} parent=11 // pred_check_branch
          %194 = sbr.rel (%p192) target = $region20
        $region19: #{tpu_custom_call.1} parent=11 // pred_region
          _
        $region20: #{tpu_custom_call.1} parent=11 // pred_fallthru
          _
      $region12: #{tpu_custom_call.1} parent=5 // pred_fallthru
        _
      %p195 = scmp.lt.s32.totalorder %s14, 4
      // Predicated region
      $region21: #{tpu_custom_call.1} parent=5 // pred_check
        %p196 = pneg %p195
      $region22: #{tpu_custom_call.1} parent=5 // pred_check_branch
        %198 = sbr.rel (%p196) target = $region24
      $region23: #{tpu_custom_call.1} parent=5 // pred_region
        // Predicated region
        $region25: #{tpu_custom_call.1} parent=23 // pred_check
          %p199 = pneg %p46
        $region26: #{tpu_custom_call.1} parent=23 // pred_check_branch
          %201 = sbr.rel (%p199) target = $region28
        $region27: #{tpu_custom_call.1} parent=23 // pred_region
          %p202 = scmp.lt.s32.totalorder %s21, 1
          %s203 = scalar_select %p202, %s21, 1
          %s204 = smul.addr %s203, 8
          %s205 = scalar_lea.vmem %s0, %s204
        $region28: #{tpu_custom_call.1} parent=23 // pred_fallthru
          _
        // Predicated region
        $region29: #{tpu_custom_call.1} parent=23 // pred_check
          %p206 = pneg %p114
        $region30: #{tpu_custom_call.1} parent=23 // pred_check_branch
          %208 = sbr.rel (%p206) target = $region32
        $region31: #{tpu_custom_call.1} parent=23 // pred_region
          %s209 = smul.u32 16, %s22
          %p210 = scmp.lt.s32.totalorder %s209, 31
          %s211 = scalar_select %p210, %s209, 31
          %s212 = smul.addr %s211, 8
          %s213 = scalar_lea.vmem %s3, %s212
          %s214 = smul.u32 16, %s22
        $region32: #{tpu_custom_call.1} parent=23 // pred_fallthru
          _
        // Predicated region
        $region33: #{tpu_custom_call.1} parent=23 // pred_check
          %p215 = pneg %p140
        $region34: #{tpu_custom_call.1} parent=23 // pred_check_branch
          %217 = sbr.rel (%p215) target = $region36
        $region35: #{tpu_custom_call.1} parent=23 // pred_region
          %p218 = scmp.lt.s32.totalorder %s22, 1
          %s219 = scalar_select %p218, %s22, 1
          %s220 = scalar_lea.vmem %s4, %s219
        $region36: #{tpu_custom_call.1} parent=23 // pred_fallthru
          _
      $region24: #{tpu_custom_call.1} parent=5 // pred_fallthru
        _
      %p221 = scmp.le.s32.totalorder 1, %s14
      %p222 = scmp.lt.s32.totalorder %s14, 5
      %p223 = pnand %p221, %p222
      %p224 = pneg %p223
      // Predicated region
      $region37: #{tpu_custom_call.1} parent=5 // pred_check
        _
      $region38: #{tpu_custom_call.1} parent=5 // pred_check_branch
        %226 = sbr.rel (%p223) target = $region40
      $region39: #{tpu_custom_call.1} parent=5 // pred_region
        %s227 = ssub.s32 %s14, 1
        %p228 = scmp.lt.s32.totalorder %s23, 1
        %s229 = scalar_select %p228, %s23, 1
        %s230 = smul.addr %s229, 8
        %s231 = scalar_lea.vmem %s0, %s230
        %p232 = pneg %p52
        %p233 = pneg %p49
        %p234 = pneg %p73
        %p235 = pneg %p70
        %p236 = pneg %p94
        %p237 = pneg %p91
        %s238 = smul.u32 16, %s24
        %p239 = scmp.lt.s32.totalorder %s238, 31
        %s240 = scalar_select %p239, %s238, 31
        %s241 = smul.addr %s240, 8
        %s242 = scalar_lea.vmem %s3, %s241
        %p243 = pneg %p120
        %p244 = pneg %p117
        %p245 = scmp.lt.s32.totalorder %s24, 1
        %s246 = scalar_select %p245, %s24, 1
        %s247 = scalar_lea.vmem %s4, %s246
        %p248 = pneg %p146
        %p249 = pneg %p143
        %p250 = pneg %p174
        %p251 = pneg %p171
        %s252 = sand.u32 %s161, 1
        %s253 = scalar_lea.sflag [#allocation4], %s252
        %s254 = sand.u32 %s161, 1
        %s255 = smul.addr %s254, 8
        %s256 = scalar_lea.vmem [#allocation3], %s255
        %p257 = scmp.lt.s32.totalorder %s23, 1
        %s258 = scalar_select %p257, %s23, 1
        %s259 = smul.addr %s258, 8
        %s260 = scalar_lea.vmem %s0, %s259
        %s261 = smul.u32 16, %s24
        %p262 = scmp.lt.s32.totalorder %s261, 31
        %s263 = scalar_select %p262, %s261, 31
        %s264 = smul.addr %s263, 8
        %s265 = scalar_lea.vmem %s3, %s264
        %s266 = smul.u32 16, %s24
        %p267 = scmp.lt.s32.totalorder %s24, 1
        %s268 = scalar_select %p267, %s24, 1
        %s269 = scalar_lea.vmem %s4, %s268
        %p270 = scmp.eq.s32.totalorder %s24, 0
        // Predicated region
        $region41: #{tpu_custom_call.1} parent=39 // pred_check
          %p271 = pneg %p270
        $region42: #{tpu_custom_call.1} parent=39 // pred_check_branch
          %273 = sbr.rel (%p271) target = $region44
        $region43: #{tpu_custom_call.1} parent=39 // pred_region
          %v274 = vld [vmem:[%s260] sm:$0xff]
          %v275 = vld [vmem:[%s1] sm:$0xff]
          %v276 = vld [vmem:[%s1 + $0x8] sm:$0xff]
          %v277 = vld [vmem:[%s1 + $0x10] sm:$0xff]
          %v278 = vld [vmem:[%s1 + $0x18] sm:$0xff]
          %v279 = vld [vmem:[%s2] sm:$0x1]
          %v281 = vlaneseq
          %v282 = vshrl.u32 %v281, 7
          %v283 = vsub.s32 0, %v282
          %v284 = vrot.slane %v279, %v283
          %vm286 = vcmask 261120
          %v288 = vsel %vm286, %v274, 0
          %290 = vmatprep.subr.mxu0 0.0
          %291 = vmatpush1.msra.mxu0 %v275
          %292 = vmatprep.subr.mxu0 0.0
          %293 = vmatpush1.msra.mxu0 %v276
          %294 = vmatprep.subr.mxu0 0.0
          %295 = vmatpush1.msra.mxu0 %v277
          %296 = vmatprep.subr.mxu0 0.0
          %297 = vmatpush1.msra.mxu0 %v278
          %298 = vmatprep.subr.mxu0 0.0
          %299 = vmatpush1.msra.mxu0 0.0
          %300 = vmatprep.subr.mxu0 0.0
          %301 = vmatpush1.msra.mxu0 0.0
          %302 = vmatprep.subr.mxu0 0.0
          %303 = vmatpush1.msra.mxu0 0.0
          %304 = vmatprep.subr.mxu0 0.0
          %305 = vmatpush1.msra.mxu0 0.0
          %306 = vmatprep.subr.mxu0 0.0
          %307 = vmatpush1.msra.mxu0 0.0
          %308 = vmatprep.subr.mxu0 0.0
          %309 = vmatpush1.msra.mxu0 0.0
          %310 = vmatprep.subr.mxu0 0.0
          %311 = vmatpush1.msra.mxu0 0.0
          %312 = vmatprep.subr.mxu0 0.0
          %313 = vmatpush1.msra.mxu0 0.0
          %314 = vmatprep.subr.mxu0 0.0
          %315 = vmatpush1.msra.mxu0 0.0
          %316 = vmatprep.subr.mxu0 0.0
          %317 = vmatpush1.msra.mxu0 0.0
          %318 = vmatprep.subr.mxu0 0.0
          %319 = vmatpush1.msra.mxu0 0.0
          %320 = vmatprep.subr.mxu0 0.0
          %321 = vmatpush1.msra.mxu0 0.0
          %322 = vmatprep.subr.mxu0 0.0
          %323 = vmatpush1.msra.mxu0 0.0
          %324 = vmatprep.subr.mxu0 0.0
          %325 = vmatpush1.msra.mxu0 0.0
          %326 = vmatprep.subr.mxu0 0.0
          %327 = vmatpush1.msra.mxu0 0.0
          %328 = vmatprep.subr.mxu0 0.0
          %329 = vmatpush1.msra.mxu0 0.0
          %330 = vmatprep.subr.mxu0 0.0
          %331 = vmatpush1.msra.mxu0 0.0
          %332 = vmatprep.subr.mxu0 0.0
          %333 = vmatpush1.msra.mxu0 0.0
          %334 = vmatprep.subr.mxu0 0.0
          %335 = vmatpush1.msra.mxu0 0.0
          %336 = vmatprep.subr.mxu0 0.0
          %337 = vmatpush1.msra.mxu0 0.0
          %338 = vmatprep.subr.mxu0 0.0
          %339 = vmatpush1.msra.mxu0 0.0
          %340 = vmatprep.subr.mxu0 0.0
          %341 = vmatpush1.msra.mxu0 0.0
          %342 = vmatprep.subr.mxu0 0.0
          %343 = vmatpush1.msra.mxu0 0.0
          %344 = vmatprep.subr.mxu0 0.0
          %345 = vmatpush1.msra.mxu0 0.0
          %346 = vmatprep.subr.mxu0 0.0
          %347 = vmatpush1.msra.mxu0 0.0
          %348 = vmatprep.subr.mxu0 0.0
          %349 = vmatpush1.msra.mxu0 0.0
          %350 = vmatprep.subr.mxu0 0.0
          %351 = vmatpush1.msra.mxu0 0.0
          %352 = vmatprep.subr.mxu0 0.0
          %353 = vmatpush1.msra.mxu0 0.0
          %354 = vmatprep.mubr.f32.mxu0 0.0
          %355 = vmatmul.mubr.f32.gmra.mrb[0].mxu0 %v288
          %v356 = vpop.f32.mrb[0].mxu0
          %v357 = vadd.f32 %v284, %v356
          %v358 = vpop.f32.mrb[0].mxu0
          %359 = vdwg.mxu0
          %v360 = vmax.f32 %v357, 0.0
          %361 = vst.msk [vmem:[#allocation2] sm:$0xff] %vm286, %v360
        $region44: #{tpu_custom_call.1} parent=39 // pred_fallthru
          _
        %v362 = vld [vmem:[#allocation2] sm:$0xff]
        %v363 = vld [vmem:[%s265] sm:$0xff]
        %v364 = vld [vmem:[%s265 + $0x8] sm:$0xff]
        %v365 = vld [vmem:[%s265 + $0x10] sm:$0xff]
        %v366 = vld [vmem:[%s265 + $0x18] sm:$0xff]
        %v367 = vld [vmem:[%s265 + $0x20] sm:$0xff]
        %v368 = vld [vmem:[%s265 + $0x28] sm:$0xff]
        %v369 = vld [vmem:[%s265 + $0x30] sm:$0xff]
        %v370 = vld [vmem:[%s265 + $0x38] sm:$0xff]
        %v371 = vld [vmem:[%s265 + $0x40] sm:$0xff]
        %v372 = vld [vmem:[%s265 + $0x48] sm:$0xff]
        %v373 = vld [vmem:[%s265 + $0x50] sm:$0xff]
        %v374 = vld [vmem:[%s265 + $0x58] sm:$0xff]
        %v375 = vld [vmem:[%s265 + $0x60] sm:$0xff]
        %v376 = vld [vmem:[%s265 + $0x68] sm:$0xff]
        %v377 = vld [vmem:[%s265 + $0x70] sm:$0xff]
        %v378 = vld [vmem:[%s265 + $0x78] sm:$0xff]
        %v379 = vld [vmem:[%s269] sm:$0x1]
        %v381 = vlaneseq
        %v382 = vshrl.u32 %v381, 7
        %v383 = vsub.s32 0, %v382
        %v384 = vrot.slane %v379, %v383
        %vm386 = vcmask 261120
        %v388 = vsel %vm386, %v362, 0
        %v391 = vsel %vm386, %v363, 0
        %v394 = vsel %vm386, %v364, 0
        %v397 = vsel %vm386, %v365, 0
        %v400 = vsel %vm386, %v366, 0
        %v403 = vsel %vm386, %v367, 0
        %v406 = vsel %vm386, %v368, 0
        %v409 = vsel %vm386, %v369, 0
        %v412 = vsel %vm386, %v370, 0
        %v415 = vsel %vm386, %v371, 0
        %v418 = vsel %vm386, %v372, 0
        %v421 = vsel %vm386, %v373, 0
        %v424 = vsel %vm386, %v374, 0
        %v427 = vsel %vm386, %v375, 0
        %v430 = vsel %vm386, %v376, 0
        %v433 = vsel %vm386, %v377, 0
        %v436 = vsel %vm386, %v378, 0
        %438 = vmatprep.subr.mxu0 0.0
        %439 = vmatpush1.xpose.msra.mxu0 %v391
        %440 = vmatprep.subr.mxu0 0.0
        %441 = vmatpush1.xpose.msra.mxu0 %v394
        %442 = vmatprep.subr.mxu0 0.0
        %443 = vmatpush1.xpose.msra.mxu0 %v397
        %444 = vmatprep.subr.mxu0 0.0
        %445 = vmatpush1.xpose.msra.mxu0 %v400
        %446 = vmatprep.subr.mxu0 0.0
        %447 = vmatpush1.xpose.msra.mxu0 %v403
        %448 = vmatprep.subr.mxu0 0.0
        %449 = vmatpush1.xpose.msra.mxu0 %v406
        %450 = vmatprep.subr.mxu0 0.0
        %451 = vmatpush1.xpose.msra.mxu0 %v409
        %452 = vmatprep.subr.mxu0 0.0
        %453 = vmatpush1.xpose.msra.mxu0 %v412
        %454 = vmatprep.subr.mxu0 0.0
        %455 = vmatpush1.xpose.msra.mxu0 %v415
        %456 = vmatprep.subr.mxu0 0.0
        %457 = vmatpush1.xpose.msra.mxu0 %v418
        %458 = vmatprep.subr.mxu0 0.0
        %459 = vmatpush1.xpose.msra.mxu0 %v421
        %460 = vmatprep.subr.mxu0 0.0
        %461 = vmatpush1.xpose.msra.mxu0 %v424
        %462 = vmatprep.subr.mxu0 0.0
        %463 = vmatpush1.xpose.msra.mxu0 %v427
        %464 = vmatprep.subr.mxu0 0.0
        %465 = vmatpush1.xpose.msra.mxu0 %v430
        %466 = vmatprep.subr.mxu0 0.0
        %467 = vmatpush1.xpose.msra.mxu0 %v433
        %468 = vmatprep.subr.mxu0 0.0
        %469 = vmatpush1.xpose.msra.mxu0 %v436
        %470 = vmatprep.subr.mxu0 0.0
        %471 = vmatpush1.xpose.msra.mxu0 0.0
        %472 = vmatprep.subr.mxu0 0.0
        %473 = vmatpush1.xpose.msra.mxu0 0.0
        %474 = vmatprep.subr.mxu0 0.0
        %475 = vmatpush1.xpose.msra.mxu0 0.0
        %476 = vmatprep.subr.mxu0 0.0
        %477 = vmatpush1.xpose.msra.mxu0 0.0
        %478 = vmatprep.subr.mxu0 0.0
        %479 = vmatpush1.xpose.msra.mxu0 0.0
        %480 = vmatprep.subr.mxu0 0.0
        %481 = vmatpush1.xpose.msra.mxu0 0.0
        %482 = vmatprep.subr.mxu0 0.0
        %483 = vmatpush1.xpose.msra.mxu0 0.0
        %484 = vmatprep.subr.mxu0 0.0
        %485 = vmatpush1.xpose.msra.mxu0 0.0
        %486 = vmatprep.subr.mxu0 0.0
        %487 = vmatpush1.xpose.msra.mxu0 0.0
        %488 = vmatprep.subr.mxu0 0.0
        %489 = vmatpush1.xpose.msra.mxu0 0.0
        %490 = vmatprep.subr.mxu0 0.0
        %491 = vmatpush1.xpose.msra.mxu0 0.0
        %492 = vmatprep.subr.mxu0 0.0
        %493 = vmatpush1.xpose.msra.mxu0 0.0
        %494 = vmatprep.subr.mxu0 0.0
        %495 = vmatpush1.xpose.msra.mxu0 0.0
        %496 = vmatprep.subr.mxu0 0.0
        %497 = vmatpush1.xpose.msra.mxu0 0.0
        %498 = vmatprep.subr.mxu0 0.0
        %499 = vmatpush1.xpose.msra.mxu0 0.0
        %500 = vmatprep.subr.mxu0 0.0
        %501 = vmatpush1.xpose.msra.mxu0 0.0
        %502 = vmatprep.mubr.f32.mxu0 0.0
        %503 = vmatmul.mubr.f32.gmra.mrb[0].mxu0 %v388
        %v504 = vpop.f32.mrb[0].mxu0
        %v505 = vadd.f32 %v384, %v504
        %v506 = vpop.f32.mrb[0].mxu0
        %507 = vdwg.mxu0
        %508 = vst [vmem:[%s256] sm:$0xff] %v505
        %s509 = sand.u32 %s161, 1
        %s510 = scalar_lea.sflag [#allocation4], %s509
        %s511 = sand.u32 %s161, 1
        %s512 = smul.addr %s511, 8
        %s513 = scalar_lea.vmem [#allocation3], %s512
        // Predicated region
        $region45: #{tpu_custom_call.1} parent=39 // pred_check
          %p514 = pneg %p171
        $region46: #{tpu_custom_call.1} parent=39 // pred_check_branch
          %516 = sbr.rel (%p514) target = $region48
        $region47: #{tpu_custom_call.1} parent=39 // pred_region
          %s518 = ssub.s32 128, 128
          %519 = vsyncadd %s510, %s518
          %s520 = smul.addr %s23, 2
          %s521 = sadd.s32 %s24, %s520
          %s522 = smul.addr %s521, 128
          %s523 = scalar_lea.hbm %s5, %s522
          %s525 = sshll.u32 %s513, 4
          %s526 = int_to_ptr.vmem [resolvable:$true] %s525
          %528 = dma.vmem_to_hbm [thread:$0]  %s526, 128, %s523, %s510
        $region48: #{tpu_custom_call.1} parent=39 // pred_fallthru
          _
      $region40: #{tpu_custom_call.1} parent=5 // pred_fallthru
        _
      %p529 = scmp.le.s32.totalorder 2, %s14
      // Predicated region
      $region49: #{tpu_custom_call.1} parent=5 // pred_check
        %p530 = pneg %p529
      $region50: #{tpu_custom_call.1} parent=5 // pred_check_branch
        %532 = sbr.rel (%p530) target = $region52
      $region51: #{tpu_custom_call.1} parent=5 // pred_region
        %s533 = ssub.s32 %s14, 2
        // Predicated region
        $region53: #{tpu_custom_call.1} parent=51 // pred_check
          %p534 = pneg %p177
        $region54: #{tpu_custom_call.1} parent=51 // pred_check_branch
          %536 = sbr.rel (%p534) target = $region56
        $region55: #{tpu_custom_call.1} parent=51 // pred_region
          %s537 = sand.u32 %s162, 1
          %s538 = scalar_lea.sflag [#allocation4], %s537
          %s539 = sand.u32 %s162, 1
          %s540 = smul.addr %s539, 8
          %s541 = scalar_lea.vmem [#allocation3], %s540
          %542 = dma.done %s538, 128
        $region56: #{tpu_custom_call.1} parent=51 // pred_fallthru
          _
      $region52: #{tpu_custom_call.1} parent=5 // pred_fallthru
        _
    $region6: #{tpu_custom_call.1} parent=1 // loop_footer
      %s18 = sadd.s32 1, %s14
    $region7: #{tpu_custom_call.1} parent=1 // loop_footer_branch
      %13 = sbr.rel target = $region3
    $region8: #{tpu_custom_call.1} parent=1 // loop_exit
      _
    %543 = vsyncpa [#allocation4], 1
    %s544 = scalar_lea.sflag [#allocation4], 1
    %545 = vsyncpa %s544, 1

</llo_original>
